<compile_context>
chip_gen: v6e
topology: v6e:2x2x1
jax: 0.10.0
libtpu: 0.0.40
codegen_flags: <defaults>
</compile_context>

<pallas_src>
import jax
import jax.numpy as jnp
from jax.experimental import pallas as pl
from jax.experimental.pallas import tpu as pltpu

TB_MAX = 32768            # hard cap on batch-tile rows
VMEM_BUDGET = 24 << 20    # conservative per-kernel VMEM budget (bytes), fits all gens


def _qnetwork_kernel(x_ref, w1_ref, b1_ref, w2_ref, b2_ref, w3_ref, b3_ref,
                     out_ref):
    # One batch tile per grid step; weights/biases use constant index_maps so
    # they stay VMEM-resident across all grid steps.
    x = x_ref[...].astype(jnp.float32)  # mirrors x.float()

    h1 = jnp.dot(x, w1_ref[...], preferred_element_type=jnp.float32) + b1_ref[...]
    h1 = jnp.maximum(h1, 0.0)  # ReLU

    h2 = jnp.dot(h1, w2_ref[...], preferred_element_type=jnp.float32) + b2_ref[...]
    h2 = jnp.maximum(h2, 0.0)  # ReLU

    out_ref[...] = (
        jnp.dot(h2, w3_ref[...], preferred_element_type=jnp.float32) + b3_ref[...]
    )


def _round_up(v, m):
    return ((v + m - 1) // m) * m


@jax.jit
def qnetwork_forward(x, w1, b1, w2, b2, w3, b3):
    batch, obs_dim = x.shape
    hidden = w1.shape[1]
    n_actions = w3.shape[1]

    # Accept PyTorch-style 1-D biases; keep everything f32.
    w1 = w1.astype(jnp.float32)
    w2 = w2.astype(jnp.float32)
    w3 = w3.astype(jnp.float32)
    b1 = b1.reshape(1, hidden).astype(jnp.float32)
    b2 = b2.reshape(1, hidden).astype(jnp.float32)
    b3 = b3.reshape(1, n_actions).astype(jnp.float32)

    # ---- batch-tile selection (no materialized padding of x) ----------------
    # Double-buffered per-row f32 footprint: x tile in + out tile out.
    bytes_per_row = 2 * (obs_dim + n_actions) * 4
    vmem_rows = max(8, ((VMEM_BUDGET // bytes_per_row) // 8) * 8)
    if batch <= 8:
        tb = batch                         # block == full array dim (always legal)
    else:
        # >= 2 grid steps so both TensorCores get work on v7x; sublane-aligned.
        tb = _round_up(pl.cdiv(batch, 2), 8)
        tb = min(tb, TB_MAX, vmem_rows)
    grid = (pl.cdiv(batch, tb),)           # ragged last tile handled by Pallas

    flops = 2 * batch * (obs_dim * hidden + hidden * hidden + hidden * n_actions)
    bytes_accessed = (
        batch * obs_dim * x.dtype.itemsize
        + batch * n_actions * 4
        + 4 * (w1.size + b1.size + w2.size + b2.size + w3.size + b3.size)
    )
    cost = pl.CostEstimate(flops=flops, transcendentals=0,
                           bytes_accessed=bytes_accessed)

    def resident(arr):
        # Whole array, constant block index -> resident in VMEM across steps.
        return pl.BlockSpec(arr.shape, lambda i: (0, 0))

    out = pl.pallas_call(
        _qnetwork_kernel,
        out_shape=jax.ShapeDtypeStruct((batch, n_actions), jnp.float32),
        grid=grid,
        in_specs=[
            pl.BlockSpec((tb, obs_dim), lambda i: (i, 0)),
            resident(w1), resident(b1),
            resident(w2), resident(b2),
            resident(w3), resident(b3),
        ],
        out_specs=pl.BlockSpec((tb, n_actions), lambda i: (i, 0)),
        compiler_params=pltpu.CompilerParams(
            dimension_semantics=("parallel",)),
        cost_estimate=cost,
    )(x, w1, b1, w2, b2, w3, b3)
    return out


def init_params(key, obs_dim, n_actions, hidden=6):
    """Deterministic init mimicking PyTorch nn.Linear default (uniform +/- 1/sqrt(fan_in))."""
    keys = jax.random.split(key, 6)

    def linear(kw, kb, fan_in, fan_out):
        bound = 1.0 / jnp.sqrt(jnp.float32(fan_in))
        w = jax.random.uniform(kw, (fan_in, fan_out), jnp.float32, -bound, bound)
        b = jax.random.uniform(kb, (1, fan_out), jnp.float32, -bound, bound)
        return w, b

    w1, b1 = linear(keys[0], keys[1], obs_dim, hidden)
    w2, b2 = linear(keys[2], keys[3], hidden, hidden)
    w3, b3 = linear(keys[4], keys[5], hidden, n_actions)
    return w1, b1, w2, b2, w3, b3


def reference_forward(x, w1, b1, w2, b2, w3, b3):
    x = x.astype(jnp.float32)
    h1 = jnp.maximum(x @ w1 + b1, 0.0)
    h2 = jnp.maximum(h1 @ w2 + b2, 0.0)
    return h2 @ w3 + b3


if __name__ == "__main__":
    key = jax.random.PRNGKey(0)
    k_x, k_x2, k_p = jax.random.split(key, 3)

    # Small shapes consistent with the module: flat observation vector in,
    # Q-values (one per discrete action) out.
    batch, obs_dim, n_actions = 8, 4, 4

    params = init_params(k_p, obs_dim, n_actions)

    # Single-tile case.
    x = jax.random.normal(k_x, (batch, obs_dim), dtype=jnp.float32)
    out = jax.block_until_ready(qnetwork_forward(x, *params))
    ref = reference_forward(x, *params)
    assert out.shape == (batch, n_actions)
    assert jnp.allclose(out, ref, atol=1e-5, rtol=1e-5), "mismatch vs. reference"

    # Multi-tile case with a ragged last tile (exercises partial-block masking).
    x2 = jax.random.normal(k_x2, (20, obs_dim), dtype=jnp.float32)
    out2 = jax.block_until_ready(qnetwork_forward(x2, *params))
    ref2 = reference_forward(x2, *params)
    assert out2.shape == (20, n_actions)
    assert jnp.allclose(out2, ref2, atol=1e-5, rtol=1e-5), "mismatch vs. reference (ragged)"

    print("KERNEL_OK")
</pallas_src>

<mosaic_0001>
module attributes {stable_mosaic.version = 11 : i64} {
  func.func @_qnetwork_kernel(%arg0: i32, %arg1: memref<8x4xf32, #tpu.memory_space<vmem>>, %arg2: memref<4x6xf32, #tpu.memory_space<vmem>>, %arg3: memref<1x6xf32, #tpu.memory_space<vmem>>, %arg4: memref<6x6xf32, #tpu.memory_space<vmem>>, %arg5: memref<1x6xf32, #tpu.memory_space<vmem>>, %arg6: memref<6x4xf32, #tpu.memory_space<vmem>>, %arg7: memref<1x4xf32, #tpu.memory_space<vmem>>, %arg8: memref<8x4xf32, #tpu.memory_space<vmem>>) attributes {dimension_semantics = [#tpu.dimension_semantics<parallel>], iteration_bounds = array<i64: 1>, scalar_prefetch = 0 : i64, scratch_operands = 0 : i64, tpu.core_type = #tpu.core_type<tc>, window_params = [{transform_indices = @transform_0, window_bounds = array<i64: 8, 4>}, {pipeline_mode = #tpu.pipeline_mode<synchronous>, transform_indices = @transform_1, window_bounds = array<i64: 4, 6>}, {pipeline_mode = #tpu.pipeline_mode<synchronous>, transform_indices = @transform_2, window_bounds = array<i64: 1, 6>}, {pipeline_mode = #tpu.pipeline_mode<synchronous>, transform_indices = @transform_3, window_bounds = array<i64: 6, 6>}, {pipeline_mode = #tpu.pipeline_mode<synchronous>, transform_indices = @transform_4, window_bounds = array<i64: 1, 6>}, {pipeline_mode = #tpu.pipeline_mode<synchronous>, transform_indices = @transform_5, window_bounds = array<i64: 6, 4>}, {pipeline_mode = #tpu.pipeline_mode<synchronous>, transform_indices = @transform_6, window_bounds = array<i64: 1, 4>}, {transform_indices = @transform_7, window_bounds = array<i64: 8, 4>}]} {
    %c0 = arith.constant 0 : index
    %c0_0 = arith.constant 0 : index
    %0 = vector.load %arg1[%c0, %c0_0] : memref<8x4xf32, #tpu.memory_space<vmem>>, vector<8x4xf32>
    %c0_1 = arith.constant 0 : index
    %c0_2 = arith.constant 0 : index
    %1 = vector.load %arg2[%c0_1, %c0_2] : memref<4x6xf32, #tpu.memory_space<vmem>>, vector<4x6xf32>
    %cst = arith.constant dense<0.000000e+00> : vector<8x6xf32>
    %2 = tpu.matmul %0, %1, %cst {dimension_numbers = #tpu.dot_dimension_numbers<[1], [0], [0], [1], [0, 0, 1, 1], [], []>} : vector<8x4xf32>, vector<4x6xf32>, vector<8x6xf32> -> vector<8x6xf32>
    %c0_3 = arith.constant 0 : index
    %c0_4 = arith.constant 0 : index
    %3 = vector.load %arg3[%c0_3, %c0_4] : memref<1x6xf32, #tpu.memory_space<vmem>>, vector<1x6xf32>
    %4 = vector.broadcast %3 : vector<1x6xf32> to vector<8x6xf32>
    %5 = arith.addf %2, %4 : vector<8x6xf32>
    %cst_5 = arith.constant 0.000000e+00 : f32
    %6 = vector.broadcast %cst_5 : f32 to vector<8x6xf32>
    %7 = arith.maximumf %5, %6 : vector<8x6xf32>
    %c0_6 = arith.constant 0 : index
    %c0_7 = arith.constant 0 : index
    %8 = vector.load %arg4[%c0_6, %c0_7] : memref<6x6xf32, #tpu.memory_space<vmem>>, vector<6x6xf32>
    %cst_8 = arith.constant dense<0.000000e+00> : vector<8x6xf32>
    %9 = tpu.matmul %7, %8, %cst_8 {dimension_numbers = #tpu.dot_dimension_numbers<[1], [0], [0], [1], [0, 0, 1, 1], [], []>} : vector<8x6xf32>, vector<6x6xf32>, vector<8x6xf32> -> vector<8x6xf32>
    %c0_9 = arith.constant 0 : index
    %c0_10 = arith.constant 0 : index
    %10 = vector.load %arg5[%c0_9, %c0_10] : memref<1x6xf32, #tpu.memory_space<vmem>>, vector<1x6xf32>
    %11 = vector.broadcast %10 : vector<1x6xf32> to vector<8x6xf32>
    %12 = arith.addf %9, %11 : vector<8x6xf32>
    %cst_11 = arith.constant 0.000000e+00 : f32
    %13 = vector.broadcast %cst_11 : f32 to vector<8x6xf32>
    %14 = arith.maximumf %12, %13 : vector<8x6xf32>
    %c0_12 = arith.constant 0 : index
    %c0_13 = arith.constant 0 : index
    %15 = vector.load %arg6[%c0_12, %c0_13] : memref<6x4xf32, #tpu.memory_space<vmem>>, vector<6x4xf32>
    %cst_14 = arith.constant dense<0.000000e+00> : vector<8x4xf32>
    %16 = tpu.matmul %14, %15, %cst_14 {dimension_numbers = #tpu.dot_dimension_numbers<[1], [0], [0], [1], [0, 0, 1, 1], [], []>} : vector<8x6xf32>, vector<6x4xf32>, vector<8x4xf32> -> vector<8x4xf32>
    %c0_15 = arith.constant 0 : index
    %c0_16 = arith.constant 0 : index
    %17 = vector.load %arg7[%c0_15, %c0_16] : memref<1x4xf32, #tpu.memory_space<vmem>>, vector<1x4xf32>
    %18 = vector.broadcast %17 : vector<1x4xf32> to vector<8x4xf32>
    %19 = arith.addf %16, %18 : vector<8x4xf32>
    %c0_17 = arith.constant 0 : index
    %c0_18 = arith.constant 0 : index
    %20 = vector.load %arg8[%c0_17, %c0_18] : memref<8x4xf32, #tpu.memory_space<vmem>>, vector<8x4xf32>
    tpu.vector_store %arg8[%c0_17, %c0_18], %19 {strides = array<i32>} : memref<8x4xf32, #tpu.memory_space<vmem>>, vector<8x4xf32>,
    return
  }
  func.func @transform_0(%arg0: i32) -> (i32, i32) {
    %c0_i32 = arith.constant 0 : i32
    %c0_i32_0 = arith.constant 0 : i32
    return %arg0, %c0_i32 : i32, i32
  }
  func.func @transform_1(%arg0: i32) -> (i32, i32) {
    %c0_i32 = arith.constant 0 : i32
    %c0_i32_0 = arith.constant 0 : i32
    %c0_i32_1 = arith.constant 0 : i32
    return %c0_i32, %c0_i32_0 : i32, i32
  }
  func.func @transform_2(%arg0: i32) -> (i32, i32) {
    %c0_i32 = arith.constant 0 : i32
    %c0_i32_0 = arith.constant 0 : i32
    %c0_i32_1 = arith.constant 0 : i32
    return %c0_i32, %c0_i32_0 : i32, i32
  }
  func.func @transform_3(%arg0: i32) -> (i32, i32) {
    %c0_i32 = arith.constant 0 : i32
    %c0_i32_0 = arith.constant 0 : i32
    %c0_i32_1 = arith.constant 0 : i32
    return %c0_i32, %c0_i32_0 : i32, i32
  }
  func.func @transform_4(%arg0: i32) -> (i32, i32) {
    %c0_i32 = arith.constant 0 : i32
    %c0_i32_0 = arith.constant 0 : i32
    %c0_i32_1 = arith.constant 0 : i32
    return %c0_i32, %c0_i32_0 : i32, i32
  }
  func.func @transform_5(%arg0: i32) -> (i32, i32) {
    %c0_i32 = arith.constant 0 : i32
    %c0_i32_0 = arith.constant 0 : i32
    %c0_i32_1 = arith.constant 0 : i32
    return %c0_i32, %c0_i32_0 : i32, i32
  }
  func.func @transform_6(%arg0: i32) -> (i32, i32) {
    %c0_i32 = arith.constant 0 : i32
    %c0_i32_0 = arith.constant 0 : i32
    %c0_i32_1 = arith.constant 0 : i32
    return %c0_i32, %c0_i32_0 : i32, i32
  }
  func.func @transform_7(%arg0: i32) -> (i32, i32) {
    %c0_i32 = arith.constant 0 : i32
    %c0_i32_0 = arith.constant 0 : i32
    return %arg0, %c0_i32 : i32, i32
  }
}

</mosaic_0001>

<llo_original>
// kernel: qnetwork_forward.1
$region0: #{qnetwork_forward.1}
  #allocation0 [shape = 'u32[]', space=smem, size = 0x4, offset = 0x4, fixed_abs, tag = 'smem constant byte address 0x4 - core index']
  #allocation1 [shape = 'u32[144,128]{1,0:T(1,128)}', space=vmem, size = 0x12000, scoped, tag = 'internal scratch']
  %s0 = inlined_call_operand.vmem [shape: f32[8,4], index: 0, kind: input, shape index: {}]
  %s1 = inlined_call_operand.vmem [shape: f32[4,6], index: 1, kind: input, shape index: {}]
  %s2 = inlined_call_operand.vmem [shape: f32[1,6], index: 2, kind: input, shape index: {}]
  %s3 = inlined_call_operand.vmem [shape: f32[6,6], index: 3, kind: input, shape index: {}]
  %s4 = inlined_call_operand.vmem [shape: f32[1,6], index: 4, kind: input, shape index: {}]
  %s5 = inlined_call_operand.vmem [shape: f32[6,4], index: 5, kind: input, shape index: {}]
  %s6 = inlined_call_operand.vmem [shape: f32[1,4], index: 6, kind: input, shape index: {}]
  %s7 = inlined_call_operand.vmem [shape: f32[8,4], index: 7, kind: output, shape index: {}]
  %s8 = sld [smem:[#allocation0]]
  $region38: #{qnetwork_forward.1} parent=0
    _
  %s10 = ssub.s32 1, %s8
  %s11 = scalar_select 0, %s10, %s8
  // Predicated region
  $region2: #{qnetwork_forward.1} parent=0 // pred_check
    _
  $region3: #{qnetwork_forward.1} parent=0 // pred_check_branch
    %13 = sbr.rel (0) target = $region5
  $region4: #{qnetwork_forward.1} parent=0 // pred_region
    _
  $region5: #{qnetwork_forward.1} parent=0 // pred_fallthru
    _
  // Predicated region
  $region6: #{qnetwork_forward.1} parent=0 // pred_check
    _
  $region7: #{qnetwork_forward.1} parent=0 // pred_check_branch
    %15 = sbr.rel (0) target = $region9
  $region8: #{qnetwork_forward.1} parent=0 // pred_region
    _
  $region9: #{qnetwork_forward.1} parent=0 // pred_fallthru
    _
  // Predicated region
  $region10: #{qnetwork_forward.1} parent=0 // pred_check
    _
  $region11: #{qnetwork_forward.1} parent=0 // pred_check_branch
    %17 = sbr.rel (0) target = $region13
  $region12: #{qnetwork_forward.1} parent=0 // pred_region
    _
  $region13: #{qnetwork_forward.1} parent=0 // pred_fallthru
    _
  // Predicated region
  $region14: #{qnetwork_forward.1} parent=0 // pred_check
    _
  $region15: #{qnetwork_forward.1} parent=0 // pred_check_branch
    %19 = sbr.rel (0) target = $region17
  $region16: #{qnetwork_forward.1} parent=0 // pred_region
    _
  $region17: #{qnetwork_forward.1} parent=0 // pred_fallthru
    _
  // Predicated region
  $region18: #{qnetwork_forward.1} parent=0 // pred_check
    _
  $region19: #{qnetwork_forward.1} parent=0 // pred_check_branch
    %21 = sbr.rel (0) target = $region21
  $region20: #{qnetwork_forward.1} parent=0 // pred_region
    _
  $region21: #{qnetwork_forward.1} parent=0 // pred_fallthru
    _
  // Predicated region
  $region22: #{qnetwork_forward.1} parent=0 // pred_check
    _
  $region23: #{qnetwork_forward.1} parent=0 // pred_check_branch
    %23 = sbr.rel (0) target = $region25
  $region24: #{qnetwork_forward.1} parent=0 // pred_region
    _
  $region25: #{qnetwork_forward.1} parent=0 // pred_fallthru
    _
  // Predicated region
  $region26: #{qnetwork_forward.1} parent=0 // pred_check
    _
  $region27: #{qnetwork_forward.1} parent=0 // pred_check_branch
    %25 = sbr.rel (0) target = $region29
  $region28: #{qnetwork_forward.1} parent=0 // pred_region
    _
  $region29: #{qnetwork_forward.1} parent=0 // pred_fallthru
    _
  %v26 = vld [vmem:[%s0] sm:$0xff]
  %v27 = vld [vmem:[%s1] sm:$0xf]
  %v28 = vld [vmem:[%s2] sm:$0x1]
  %v30 = vlaneseq
  %v31 = vshrl.u32 %v30, 7
  %v32 = vsub.s32 0, %v31
  %v33 = vrot.slane %v28, %v32
  %vm35 = vcmask 31744
  %v37 = vsel %vm35, %v26, 0
  %vm39 = vcmask 1043456
  %v41 = vsel %vm39, %v27, 0
  %43 = vmatprep.subr.mxu0 0.0
  %44 = vmatpush1.msra.mxu0 0.0
  %45 = vmatprep.subr.mxu0 0.0
  %46 = vmatpush1.msra.mxu0 0.0
  %47 = vmatprep.subr.mxu0 0.0
  %48 = vmatpush1.msra.mxu0 0.0
  %49 = vmatprep.subr.mxu0 0.0
  %50 = vmatpush1.msra.mxu0 0.0
  %51 = vmatprep.subr.mxu0 0.0
  %52 = vmatpush1.msra.mxu0 0.0
  %53 = vmatprep.subr.mxu0 0.0
  %54 = vmatpush1.msra.mxu0 0.0
  %55 = vmatprep.subr.mxu0 0.0
  %56 = vmatpush1.msra.mxu0 0.0
  %57 = vmatprep.subr.mxu0 0.0
  %58 = vmatpush1.msra.mxu0 0.0
  %59 = vmatprep.subr.mxu0 0.0
  %60 = vmatpush1.msra.mxu0 0.0
  %61 = vmatprep.subr.mxu0 0.0
  %62 = vmatpush1.msra.mxu0 0.0
  %63 = vmatprep.subr.mxu0 0.0
  %64 = vmatpush1.msra.mxu0 0.0
  %65 = vmatprep.subr.mxu0 0.0
  %66 = vmatpush1.msra.mxu0 0.0
  %67 = vmatprep.subr.mxu0 0.0
  %68 = vmatpush1.msra.mxu0 0.0
  %69 = vmatprep.subr.mxu0 0.0
  %70 = vmatpush1.msra.mxu0 0.0
  %71 = vmatprep.subr.mxu0 0.0
  %72 = vmatpush1.msra.mxu0 0.0
  %73 = vmatprep.subr.mxu0 0.0
  %74 = vmatpush1.msra.mxu0 %v41
  %75 = vmatprep.subr.mxu0 0.0
  %76 = vmatpush2.msra.mxu0 0.0
  %77 = vmatprep.subr.mxu0 0.0
  %78 = vmatpush2.msra.mxu0 0.0
  %79 = vmatprep.subr.mxu0 0.0
  %80 = vmatpush2.msra.mxu0 0.0
  %81 = vmatprep.subr.mxu0 0.0
  %82 = vmatpush2.msra.mxu0 0.0
  %83 = vmatprep.subr.mxu0 0.0
  %84 = vmatpush2.msra.mxu0 0.0
  %85 = vmatprep.subr.mxu0 0.0
  %86 = vmatpush2.msra.mxu0 0.0
  %87 = vmatprep.subr.mxu0 0.0
  %88 = vmatpush2.msra.mxu0 0.0
  %89 = vmatprep.subr.mxu0 0.0
  %90 = vmatpush2.msra.mxu0 0.0
  %91 = vmatprep.subr.mxu0 0.0
  %92 = vmatpush2.msra.mxu0 0.0
  %93 = vmatprep.subr.mxu0 0.0
  %94 = vmatpush2.msra.mxu0 0.0
  %95 = vmatprep.subr.mxu0 0.0
  %96 = vmatpush2.msra.mxu0 0.0
  %97 = vmatprep.subr.mxu0 0.0
  %98 = vmatpush2.msra.mxu0 0.0
  %99 = vmatprep.subr.mxu0 0.0
  %100 = vmatpush2.msra.mxu0 0.0
  %101 = vmatprep.subr.mxu0 0.0
  %102 = vmatpush2.msra.mxu0 0.0
  %103 = vmatprep.subr.mxu0 0.0
  %104 = vmatpush2.msra.mxu0 0.0
  %105 = vmatprep.subr.mxu0 0.0
  %106 = vmatpush2.msra.mxu0 0.0
  %107 = vmatprep.mubr.f32.mxu0 0.0
  %108 = vmatmul.mubr.f32.gmra.mxu0 %v37
  %v109 = vpop.f32.mrf.mxu0
  %v110 = vadd.f32 %v33, %v109
  %v111 = vpop.f32.mrf.mxu0
  %112 = vdwg.mxu0
  %v113 = vmax.f32 %v110, 0.0
  %v114 = vld [vmem:[%s3] sm:$0x3f]
  %v115 = vld [vmem:[%s4] sm:$0x1]
  %v117 = vlaneseq
  %v118 = vshrl.u32 %v117, 7
  %v119 = vsub.s32 0, %v118
  %v120 = vrot.slane %v115, %v119
  %vm122 = vcmask 48128
  %v124 = vsel %vm122, %v113, 0
  %vm126 = vcmask 1045504
  %v128 = vsel %vm126, %v114, 0
  %130 = vmatprep.subr.mxu0 0.0
  %131 = vmatpush1.msra.mxu0 0.0
  %132 = vmatprep.subr.mxu0 0.0
  %133 = vmatpush1.msra.mxu0 0.0
  %134 = vmatprep.subr.mxu0 0.0
  %135 = vmatpush1.msra.mxu0 0.0
  %136 = vmatprep.subr.mxu0 0.0
  %137 = vmatpush1.msra.mxu0 0.0
  %138 = vmatprep.subr.mxu0 0.0
  %139 = vmatpush1.msra.mxu0 0.0
  %140 = vmatprep.subr.mxu0 0.0
  %141 = vmatpush1.msra.mxu0 0.0
  %142 = vmatprep.subr.mxu0 0.0
  %143 = vmatpush1.msra.mxu0 0.0
  %144 = vmatprep.subr.mxu0 0.0
  %145 = vmatpush1.msra.mxu0 0.0
  %146 = vmatprep.subr.mxu0 0.0
  %147 = vmatpush1.msra.mxu0 0.0
  %148 = vmatprep.subr.mxu0 0.0
  %149 = vmatpush1.msra.mxu0 0.0
  %150 = vmatprep.subr.mxu0 0.0
  %151 = vmatpush1.msra.mxu0 0.0
  %152 = vmatprep.subr.mxu0 0.0
  %153 = vmatpush1.msra.mxu0 0.0
  %154 = vmatprep.subr.mxu0 0.0
  %155 = vmatpush1.msra.mxu0 0.0
  %156 = vmatprep.subr.mxu0 0.0
  %157 = vmatpush1.msra.mxu0 0.0
  %158 = vmatprep.subr.mxu0 0.0
  %159 = vmatpush1.msra.mxu0 0.0
  %160 = vmatprep.subr.mxu0 0.0
  %161 = vmatpush1.msra.mxu0 %v128
  %162 = vmatprep.subr.mxu0 0.0
  %163 = vmatpush2.msra.mxu0 0.0
  %164 = vmatprep.subr.mxu0 0.0
  %165 = vmatpush2.msra.mxu0 0.0
  %166 = vmatprep.subr.mxu0 0.0
  %167 = vmatpush2.msra.mxu0 0.0
  %168 = vmatprep.subr.mxu0 0.0
  %169 = vmatpush2.msra.mxu0 0.0
  %170 = vmatprep.subr.mxu0 0.0
  %171 = vmatpush2.msra.mxu0 0.0
  %172 = vmatprep.subr.mxu0 0.0
  %173 = vmatpush2.msra.mxu0 0.0
  %174 = vmatprep.subr.mxu0 0.0
  %175 = vmatpush2.msra.mxu0 0.0
  %176 = vmatprep.subr.mxu0 0.0
  %177 = vmatpush2.msra.mxu0 0.0
  %178 = vmatprep.subr.mxu0 0.0
  %179 = vmatpush2.msra.mxu0 0.0
  %180 = vmatprep.subr.mxu0 0.0
  %181 = vmatpush2.msra.mxu0 0.0
  %182 = vmatprep.subr.mxu0 0.0
  %183 = vmatpush2.msra.mxu0 0.0
  %184 = vmatprep.subr.mxu0 0.0
  %185 = vmatpush2.msra.mxu0 0.0
  %186 = vmatprep.subr.mxu0 0.0
  %187 = vmatpush2.msra.mxu0 0.0
  %188 = vmatprep.subr.mxu0 0.0
  %189 = vmatpush2.msra.mxu0 0.0
  %190 = vmatprep.subr.mxu0 0.0
  %191 = vmatpush2.msra.mxu0 0.0
  %192 = vmatprep.subr.mxu0 0.0
  %193 = vmatpush2.msra.mxu0 0.0
  %194 = vmatprep.mubr.f32.mxu0 0.0
  %195 = vmatmul.mubr.f32.gmra.mxu0 %v124
  %v196 = vpop.f32.mrf.mxu0
  %v197 = vadd.f32 %v120, %v196
  %v198 = vpop.f32.mrf.mxu0
  %199 = vdwg.mxu0
  %v200 = vmax.f32 %v197, 0.0
  %v201 = vld [vmem:[%s5] sm:$0x3f]
  %v202 = vld [vmem:[%s6] sm:$0x1]
  %v204 = vlaneseq
  %v205 = vshrl.u32 %v204, 7
  %v206 = vsub.s32 0, %v205
  %v207 = vrot.slane %v202, %v206
  %v210 = vsel %vm122, %v200, 0
  %v213 = vsel %vm126, %v201, 0
  %215 = vmatprep.subr.mxu0 0.0
  %216 = vmatpush1.msra.mxu0 0.0
  %217 = vmatprep.subr.mxu0 0.0
  %218 = vmatpush1.msra.mxu0 0.0
  %219 = vmatprep.subr.mxu0 0.0
  %220 = vmatpush1.msra.mxu0 0.0
  %221 = vmatprep.subr.mxu0 0.0
  %222 = vmatpush1.msra.mxu0 0.0
  %223 = vmatprep.subr.mxu0 0.0
  %224 = vmatpush1.msra.mxu0 0.0
  %225 = vmatprep.subr.mxu0 0.0
  %226 = vmatpush1.msra.mxu0 0.0
  %227 = vmatprep.subr.mxu0 0.0
  %228 = vmatpush1.msra.mxu0 0.0
  %229 = vmatprep.subr.mxu0 0.0
  %230 = vmatpush1.msra.mxu0 0.0
  %231 = vmatprep.subr.mxu0 0.0
  %232 = vmatpush1.msra.mxu0 0.0
  %233 = vmatprep.subr.mxu0 0.0
  %234 = vmatpush1.msra.mxu0 0.0
  %235 = vmatprep.subr.mxu0 0.0
  %236 = vmatpush1.msra.mxu0 0.0
  %237 = vmatprep.subr.mxu0 0.0
  %238 = vmatpush1.msra.mxu0 0.0
  %239 = vmatprep.subr.mxu0 0.0
  %240 = vmatpush1.msra.mxu0 0.0
  %241 = vmatprep.subr.mxu0 0.0
  %242 = vmatpush1.msra.mxu0 0.0
  %243 = vmatprep.subr.mxu0 0.0
  %244 = vmatpush1.msra.mxu0 0.0
  %245 = vmatprep.subr.mxu0 0.0
  %246 = vmatpush1.msra.mxu0 %v213
  %247 = vmatprep.subr.mxu0 0.0
  %248 = vmatpush2.msra.mxu0 0.0
  %249 = vmatprep.subr.mxu0 0.0
  %250 = vmatpush2.msra.mxu0 0.0
  %251 = vmatprep.subr.mxu0 0.0
  %252 = vmatpush2.msra.mxu0 0.0
  %253 = vmatprep.subr.mxu0 0.0
  %254 = vmatpush2.msra.mxu0 0.0
  %255 = vmatprep.subr.mxu0 0.0
  %256 = vmatpush2.msra.mxu0 0.0
  %257 = vmatprep.subr.mxu0 0.0
  %258 = vmatpush2.msra.mxu0 0.0
  %259 = vmatprep.subr.mxu0 0.0
  %260 = vmatpush2.msra.mxu0 0.0
  %261 = vmatprep.subr.mxu0 0.0
  %262 = vmatpush2.msra.mxu0 0.0
  %263 = vmatprep.subr.mxu0 0.0
  %264 = vmatpush2.msra.mxu0 0.0
  %265 = vmatprep.subr.mxu0 0.0
  %266 = vmatpush2.msra.mxu0 0.0
  %267 = vmatprep.subr.mxu0 0.0
  %268 = vmatpush2.msra.mxu0 0.0
  %269 = vmatprep.subr.mxu0 0.0
  %270 = vmatpush2.msra.mxu0 0.0
  %271 = vmatprep.subr.mxu0 0.0
  %272 = vmatpush2.msra.mxu0 0.0
  %273 = vmatprep.subr.mxu0 0.0
  %274 = vmatpush2.msra.mxu0 0.0
  %275 = vmatprep.subr.mxu0 0.0
  %276 = vmatpush2.msra.mxu0 0.0
  %277 = vmatprep.subr.mxu0 0.0
  %278 = vmatpush2.msra.mxu0 0.0
  %279 = vmatprep.mubr.f32.mxu0 0.0
  %280 = vmatmul.mubr.f32.gmra.mxu0 %v210
  %v281 = vpop.f32.mrf.mxu0
  %v282 = vadd.f32 %v207, %v281
  %v283 = vpop.f32.mrf.mxu0
  %284 = vdwg.mxu0
  %285 = vst.msk [vmem:[%s7] sm:$0xff] %vm35, %v282
  // Predicated region
  $region30: #{qnetwork_forward.1} parent=0 // pred_check
    _
  $region31: #{qnetwork_forward.1} parent=0 // pred_check_branch
    %287 = sbr.rel (0) target = $region33
  $region32: #{qnetwork_forward.1} parent=0 // pred_region
    _
  $region33: #{qnetwork_forward.1} parent=0 // pred_fallthru
    _
  // Predicated region
  $region34: #{qnetwork_forward.1} parent=0 // pred_check
    _
  $region35: #{qnetwork_forward.1} parent=0 // pred_check_branch
    %289 = sbr.rel (0) target = $region37
  $region36: #{qnetwork_forward.1} parent=0 // pred_region
    _
  $region37: #{qnetwork_forward.1} parent=0 // pred_fallthru
    _

</llo_original>
